<compile_context>
chip_gen: v7x
topology: tpu7x:2x2x1
jax: 0.10.0
libtpu: 0.0.40
codegen_flags: <defaults>
</compile_context>

<pallas_src>
import jax
import jax.numpy as jnp
from jax.experimental import pallas as pl
from jax.experimental.pallas import tpu as pltpu


# ----------------------------------------------------------------------------
# Pallas kernel: fused 2-layer GCN forward with in-kernel symmetric norm.
#   dinv = rsqrt(rowsum(A+I))        (padded rows have deg 0 -> dinv 0)
#   h1   = relu(dinv * (A @ (dinv * (X  @ W1))) + b1)
#   out  =       dinv * (A @ (dinv * (h1 @ W2))) + b2
# a_ref/x_ref/w?_ref are bf16; biases f32; all accumulation / elementwise f32.
# ----------------------------------------------------------------------------
def gcn_fused_kernel(a_ref, x_ref, w1_ref, b1_ref, w2_ref, b2_ref, out_ref):
    a = a_ref[...]                                                   # [Np,Np] bf16 counts

    # Fused normalization: deg row-sum (XLU) + rsqrt (EUP), all hidden under MXU.
    deg = jnp.sum(a.astype(jnp.float32), axis=1, keepdims=True)      # [Np,1] f32
    dinv = jnp.where(deg > 0.0, jax.lax.rsqrt(deg), 0.0)             # [Np,1] f32

    x = x_ref[...]                                                   # [Np,F] bf16
    w1 = w1_ref[...]                                                 # [F,H]  bf16
    b1 = b1_ref[...]                                                 # [1,H]  f32
    w2 = w2_ref[...]                                                 # [H,E]  bf16
    b2 = b2_ref[...]                                                 # [1,E]  f32

    # ---- layer 1: GCNConv(F -> H) + ReLU ----
    h = jnp.dot(x, w1, preferred_element_type=jnp.float32)           # [Np,H] f32
    h = h * dinv                                                     # D^-1/2 (X W1)
    h = jnp.dot(a, h.astype(jnp.bfloat16),
                preferred_element_type=jnp.float32)                  # (A+I) @ .
    h = jnp.maximum(h * dinv + b1, 0.0)                              # f32 VPU epilogue

    # ---- layer 2: GCNConv(H -> E) ----
    h = jnp.dot(h.astype(jnp.bfloat16), w2,
                preferred_element_type=jnp.float32)                  # [Np,E] f32
    h = h * dinv
    h = jnp.dot(a, h.astype(jnp.bfloat16),
                preferred_element_type=jnp.float32)
    out_ref[...] = (h * dinv + b2).astype(out_ref.dtype)


# ----------------------------------------------------------------------------
# Jitted wrapper: scatter-build padded (A+I) counts, pad X, one pallas_call.
# ----------------------------------------------------------------------------
@jax.jit
def gcn_forward(edge_index, x, w1, b1, w2, b2):
    """edge_index: [2,E_edges] i32, x: [N,F] f32, w1: [F,H], b1: [H], w2: [H,E], b2: [E]."""
    n, f = x.shape
    hdim = w1.shape[1]
    e = w2.shape[1]
    n_pad = pl.cdiv(n, 128) * 128    # sublane/lane aligned; keep at 128 (see header)

    # (A + I) edge counts, scattered directly into the padded buffer.
    # Padded rows/cols stay exactly zero -> deg 0 -> dinv 0 -> no contribution.
    src = edge_index[0]
    tgt = edge_index[1]
    loop = jnp.arange(n, dtype=edge_index.dtype)
    src = jnp.concatenate([src, loop])
    tgt = jnp.concatenate([tgt, loop])
    a_counts = jnp.zeros((n_pad, n_pad), jnp.float32).at[tgt, src].add(1.0)
    a_counts = a_counts.astype(jnp.bfloat16)          # small ints: exact in bf16

    x_p = jnp.zeros((n_pad, f), jnp.bfloat16).at[:n, :].set(x.astype(jnp.bfloat16))

    flops = 2 * n_pad * (f * hdim + n_pad * hdim + hdim * e + n_pad * e)
    bytes_accessed = (n_pad * n_pad * 2 + n_pad * f * 2
                      + (f * hdim + hdim * e) * 2 + (hdim + e) * 4
                      + n_pad * e * 4)

    vmem = pl.BlockSpec(memory_space=pltpu.MemorySpace.VMEM)
    out_p = pl.pallas_call(
        gcn_fused_kernel,
        out_shape=jax.ShapeDtypeStruct((n_pad, e), jnp.float32),
        in_specs=[vmem] * 6,
        out_specs=vmem,
        cost_estimate=pl.CostEstimate(flops=flops, transcendentals=n_pad,
                                      bytes_accessed=bytes_accessed),
    )(a_counts, x_p,
      w1.astype(jnp.bfloat16), b1.reshape(1, hdim).astype(jnp.float32),
      w2.astype(jnp.bfloat16), b2.reshape(1, e).astype(jnp.float32))
    return out_p[:n, :]


# ----------------------------------------------------------------------------
# Pure-JAX reference (f32, unpadded): explicit normalized A_hat.
# The per-edge scatter that builds (A+I) has no clean TPU-Pallas equivalent
# and is done in plain (jitted) JAX glue in both paths.
# ----------------------------------------------------------------------------
def build_norm_adj(edge_index, num_nodes):
    src = edge_index[0]
    tgt = edge_index[1]
    loop = jnp.arange(num_nodes, dtype=edge_index.dtype)
    src = jnp.concatenate([src, loop])
    tgt = jnp.concatenate([tgt, loop])
    a = jnp.zeros((num_nodes, num_nodes), jnp.float32).at[tgt, src].add(1.0)
    deg = a.sum(axis=1)
    dinv = jnp.where(deg > 0, 1.0 / jnp.sqrt(deg), 0.0)
    return dinv[:, None] * a * dinv[None, :]


if __name__ == "__main__":
    num_nodes = 100
    num_edges = 500
    num_features = 16
    hidden_channels = 32
    embedding_dim = 16

    key = jax.random.PRNGKey(0)
    k_e, k_x, k_w1, k_b1, k_w2, k_b2 = jax.random.split(key, 6)

    # inputs (mirrors torch.randint / torch.randn setup in the reference script)
    edge_index = jax.random.randint(k_e, (2, num_edges), 0, num_nodes, dtype=jnp.int32)
    x = jax.random.normal(k_x, (num_nodes, num_features), jnp.float32)

    # deterministic parameter init (GCNConv weight is [out,in]; we store W^T = [in,out])
    def glorot(k, fan_in, fan_out):
        lim = jnp.sqrt(6.0 / (fan_in + fan_out))
        return jax.random.uniform(k, (fan_in, fan_out), jnp.float32, -lim, lim)

    w1 = glorot(k_w1, num_features, hidden_channels)      # [F, H]
    b1 = jnp.zeros((hidden_channels,), jnp.float32)
    w2 = glorot(k_w2, hidden_channels, embedding_dim)     # [H, E]
    b2 = jnp.zeros((embedding_dim,), jnp.float32)

    out = gcn_forward(edge_index, x, w1, b1, w2, b2)
    out = jax.block_until_ready(out)

    # pure-JAX f32 reference; tolerance loosened because MXU operands are bf16
    # (accumulation stays f32).
    a_hat = build_norm_adj(edge_index, num_nodes)          # [N, N] f32
    ref = jnp.maximum(a_hat @ (x @ w1) + b1[None, :], 0.0)
    ref = a_hat @ (ref @ w2) + b2[None, :]

    assert out.shape == (num_nodes, embedding_dim)
    assert jnp.allclose(out, ref, atol=5e-2, rtol=5e-2)

    print("KERNEL_OK")
</pallas_src>

<mosaic_0001>
module attributes {stable_mosaic.version = 11 : i64} {
  func.func @gcn_fused_kernel(%arg0: memref<128x128xbf16, #tpu.memory_space<vmem>>, %arg1: memref<128x16xbf16, #tpu.memory_space<vmem>>, %arg2: memref<16x32xbf16, #tpu.memory_space<vmem>>, %arg3: memref<1x32xf32, #tpu.memory_space<vmem>>, %arg4: memref<32x16xbf16, #tpu.memory_space<vmem>>, %arg5: memref<1x16xf32, #tpu.memory_space<vmem>>, %arg6: memref<128x16xf32, #tpu.memory_space<vmem>>) attributes {dimension_semantics = [], scalar_prefetch = 0 : i64, scratch_operands = 0 : i64, tpu.core_type = #tpu.core_type<tc>} {
    %c0 = arith.constant 0 : index
    %c0_0 = arith.constant 0 : index
    %0 = vector.load %arg0[%c0, %c0_0] : memref<128x128xbf16, #tpu.memory_space<vmem>>, vector<128x128xbf16>
    %1 = arith.extf %0 : vector<128x128xbf16> to vector<128x128xf32>
    %cst = arith.constant dense<0.000000e+00> : vector<128xf32>
    %2 = vector.multi_reduction <add>, %1, %cst [1] : vector<128x128xf32> to vector<128xf32>
    %3 = vector.shape_cast %2 : vector<128xf32> to vector<128x1xf32>
    %cst_1 = arith.constant 0.000000e+00 : f32
    %4 = vector.broadcast %cst_1 : f32 to vector<128x1xf32>
    %5 = arith.cmpf ogt, %3, %4 : vector<128x1xf32>
    %6 = math.rsqrt %3 : vector<128x1xf32>
    %cst_2 = arith.constant 0.000000e+00 : f32
    %7 = vector.broadcast %cst_2 : f32 to vector<128x1xf32>
    %8 = arith.select %5, %6, %7 : vector<128x1xi1>, vector<128x1xf32>
    %c0_3 = arith.constant 0 : index
    %c0_4 = arith.constant 0 : index
    %9 = vector.load %arg1[%c0_3, %c0_4] : memref<128x16xbf16, #tpu.memory_space<vmem>>, vector<128x16xbf16>
    %c0_5 = arith.constant 0 : index
    %c0_6 = arith.constant 0 : index
    %10 = vector.load %arg2[%c0_5, %c0_6] : memref<16x32xbf16, #tpu.memory_space<vmem>>, vector<16x32xbf16>
    %c0_7 = arith.constant 0 : index
    %c0_8 = arith.constant 0 : index
    %11 = vector.load %arg3[%c0_7, %c0_8] : memref<1x32xf32, #tpu.memory_space<vmem>>, vector<1x32xf32>
    %c0_9 = arith.constant 0 : index
    %c0_10 = arith.constant 0 : index
    %12 = vector.load %arg4[%c0_9, %c0_10] : memref<32x16xbf16, #tpu.memory_space<vmem>>, vector<32x16xbf16>
    %c0_11 = arith.constant 0 : index
    %c0_12 = arith.constant 0 : index
    %13 = vector.load %arg5[%c0_11, %c0_12] : memref<1x16xf32, #tpu.memory_space<vmem>>, vector<1x16xf32>
    %cst_13 = arith.constant dense<0.000000e+00> : vector<128x32xf32>
    %14 = tpu.matmul %9, %10, %cst_13 {dimension_numbers = #tpu.dot_dimension_numbers<[1], [0], [0], [1], [0, 0, 1, 1], [], []>} : vector<128x16xbf16>, vector<16x32xbf16>, vector<128x32xf32> -> vector<128x32xf32>
    %15 = vector.broadcast %8 : vector<128x1xf32> to vector<128x32xf32>
    %16 = arith.mulf %14, %15 : vector<128x32xf32>
    %17 = arith.truncf %16 : vector<128x32xf32> to vector<128x32xbf16>
    %cst_14 = arith.constant dense<0.000000e+00> : vector<128x32xf32>
    %18 = tpu.matmul %0, %17, %cst_14 {dimension_numbers = #tpu.dot_dimension_numbers<[1], [0], [0], [1], [0, 0, 1, 1], [], []>} : vector<128x128xbf16>, vector<128x32xbf16>, vector<128x32xf32> -> vector<128x32xf32>
    %19 = vector.broadcast %8 : vector<128x1xf32> to vector<128x32xf32>
    %20 = arith.mulf %18, %19 : vector<128x32xf32>
    %21 = vector.broadcast %11 : vector<1x32xf32> to vector<128x32xf32>
    %22 = arith.addf %20, %21 : vector<128x32xf32>
    %cst_15 = arith.constant 0.000000e+00 : f32
    %23 = vector.broadcast %cst_15 : f32 to vector<128x32xf32>
    %24 = arith.maximumf %22, %23 : vector<128x32xf32>
    %25 = arith.truncf %24 : vector<128x32xf32> to vector<128x32xbf16>
    %cst_16 = arith.constant dense<0.000000e+00> : vector<128x16xf32>
    %26 = tpu.matmul %25, %12, %cst_16 {dimension_numbers = #tpu.dot_dimension_numbers<[1], [0], [0], [1], [0, 0, 1, 1], [], []>} : vector<128x32xbf16>, vector<32x16xbf16>, vector<128x16xf32> -> vector<128x16xf32>
    %27 = vector.broadcast %8 : vector<128x1xf32> to vector<128x16xf32>
    %28 = arith.mulf %26, %27 : vector<128x16xf32>
    %29 = arith.truncf %28 : vector<128x16xf32> to vector<128x16xbf16>
    %cst_17 = arith.constant dense<0.000000e+00> : vector<128x16xf32>
    %30 = tpu.matmul %0, %29, %cst_17 {dimension_numbers = #tpu.dot_dimension_numbers<[1], [0], [0], [1], [0, 0, 1, 1], [], []>} : vector<128x128xbf16>, vector<128x16xbf16>, vector<128x16xf32> -> vector<128x16xf32>
    %31 = vector.broadcast %8 : vector<128x1xf32> to vector<128x16xf32>
    %32 = arith.mulf %30, %31 : vector<128x16xf32>
    %33 = vector.broadcast %13 : vector<1x16xf32> to vector<128x16xf32>
    %34 = arith.addf %32, %33 : vector<128x16xf32>
    %c0_18 = arith.constant 0 : index
    %c0_19 = arith.constant 0 : index
    %35 = vector.load %arg6[%c0_18, %c0_19] : memref<128x16xf32, #tpu.memory_space<vmem>>, vector<128x16xf32>
    tpu.vector_store %arg6[%c0_18, %c0_19], %34 {strides = array<i32>} : memref<128x16xf32, #tpu.memory_space<vmem>>, vector<128x16xf32>,
    return
  }
}

</mosaic_0001>

<llo_original>
// kernel: gcn_forward.1
$region0: #{gcn_forward.1}
  #allocation0 [shape = 'u32[]', space=smem, size = 0x4, offset = 0x4, fixed_abs, tag = 'smem constant byte address 0x4 - core index']
  #allocation1 [shape = 'u32[144,128]{1,0:T(1,128)}', space=vmem, size = 0x12000, scoped, tag = 'internal scratch']
  %s0 = inlined_call_operand.vmem [shape: bf16[128,128], index: 0, kind: input, shape index: {}]
  %s1 = inlined_call_operand.vmem [shape: bf16[128,16], index: 1, kind: input, shape index: {}]
  %s2 = inlined_call_operand.vmem [shape: bf16[16,32], index: 2, kind: input, shape index: {}]
  %s3 = inlined_call_operand.vmem [shape: f32[1,32], index: 3, kind: input, shape index: {}]
  %s4 = inlined_call_operand.vmem [shape: bf16[32,16], index: 4, kind: input, shape index: {}]
  %s5 = inlined_call_operand.vmem [shape: f32[1,16], index: 5, kind: input, shape index: {}]
  %s6 = inlined_call_operand.vmem [shape: f32[128,16], index: 6, kind: output, shape index: {}]
  %s7 = sld [smem:[#allocation0]]
  $region34: #{gcn_forward.1} parent=0
    _
  %s9 = ssub.s32 1, %s7
  %s10 = scalar_select 0, %s9, %s7
  // Predicated region
  $region2: #{gcn_forward.1} parent=0 // pred_check
    _
  $region3: #{gcn_forward.1} parent=0 // pred_check_branch
    %12 = sbr.rel (0) target = $region5
  $region4: #{gcn_forward.1} parent=0 // pred_region
    _
  $region5: #{gcn_forward.1} parent=0 // pred_fallthru
    _
  // Predicated region
  $region6: #{gcn_forward.1} parent=0 // pred_check
    _
  $region7: #{gcn_forward.1} parent=0 // pred_check_branch
    %14 = sbr.rel (0) target = $region9
  $region8: #{gcn_forward.1} parent=0 // pred_region
    _
  $region9: #{gcn_forward.1} parent=0 // pred_fallthru
    _
  // Predicated region
  $region10: #{gcn_forward.1} parent=0 // pred_check
    _
  $region11: #{gcn_forward.1} parent=0 // pred_check_branch
    %16 = sbr.rel (0) target = $region13
  $region12: #{gcn_forward.1} parent=0 // pred_region
    _
  $region13: #{gcn_forward.1} parent=0 // pred_fallthru
    _
  // Predicated region
  $region14: #{gcn_forward.1} parent=0 // pred_check
    _
  $region15: #{gcn_forward.1} parent=0 // pred_check_branch
    %18 = sbr.rel (0) target = $region17
  $region16: #{gcn_forward.1} parent=0 // pred_region
    _
  $region17: #{gcn_forward.1} parent=0 // pred_fallthru
    _
  // Predicated region
  $region18: #{gcn_forward.1} parent=0 // pred_check
    _
  $region19: #{gcn_forward.1} parent=0 // pred_check_branch
    %20 = sbr.rel (0) target = $region21
  $region20: #{gcn_forward.1} parent=0 // pred_region
    _
  $region21: #{gcn_forward.1} parent=0 // pred_fallthru
    _
  // Predicated region
  $region22: #{gcn_forward.1} parent=0 // pred_check
    _
  $region23: #{gcn_forward.1} parent=0 // pred_check_branch
    %22 = sbr.rel (0) target = $region25
  $region24: #{gcn_forward.1} parent=0 // pred_region
    _
  $region25: #{gcn_forward.1} parent=0 // pred_fallthru
    _
  %v24 = vld [vmem:[%s0] sm:$0xf]
  %v25 = vld [vmem:[%s0 + $0x4] sm:$0xf]
  %v26 = vld [vmem:[%s0 + $0x8] sm:$0xf]
  %v27 = vld [vmem:[%s0 + $0xc] sm:$0xf]
  %v28 = vld [vmem:[%s0 + $0x10] sm:$0xf]
  %v29 = vld [vmem:[%s0 + $0x14] sm:$0xf]
  %v30 = vld [vmem:[%s0 + $0x18] sm:$0xf]
  %v31 = vld [vmem:[%s0 + $0x1c] sm:$0xf]
  %v32 = vld [vmem:[%s0 + $0x20] sm:$0xf]
  %v33 = vld [vmem:[%s0 + $0x24] sm:$0xf]
  %v34 = vld [vmem:[%s0 + $0x28] sm:$0xf]
  %v35 = vld [vmem:[%s0 + $0x2c] sm:$0xf]
  %v36 = vld [vmem:[%s0 + $0x30] sm:$0xf]
  %v37 = vld [vmem:[%s0 + $0x34] sm:$0xf]
  %v38 = vld [vmem:[%s0 + $0x38] sm:$0xf]
  %v39 = vld [vmem:[%s0 + $0x3c] sm:$0xf]
  %v40 = vunpack.c.l.bf16 %v24
  %v41 = vunpack.c.l.bf16 %v25
  %v42 = vunpack.c.l.bf16 %v26
  %v43 = vunpack.c.l.bf16 %v27
  %v44 = vunpack.c.l.bf16 %v28
  %v45 = vunpack.c.l.bf16 %v29
  %v46 = vunpack.c.l.bf16 %v30
  %v47 = vunpack.c.l.bf16 %v31
  %v48 = vunpack.c.l.bf16 %v32
  %v49 = vunpack.c.l.bf16 %v33
  %v50 = vunpack.c.l.bf16 %v34
  %v51 = vunpack.c.l.bf16 %v35
  %v52 = vunpack.c.l.bf16 %v36
  %v53 = vunpack.c.l.bf16 %v37
  %v54 = vunpack.c.l.bf16 %v38
  %v55 = vunpack.c.l.bf16 %v39
  %56 = vadd.xlane.f32.xlu0 %v40
  %v57 = vpop.xlane.xlu0 %56
  %58 = vadd.xlane.f32.xlu0 %v41
  %v59 = vpop.xlane.xlu0 %58
  %60 = vadd.xlane.f32.xlu0 %v42
  %v61 = vpop.xlane.xlu0 %60
  %62 = vadd.xlane.f32.xlu0 %v43
  %v63 = vpop.xlane.xlu0 %62
  %64 = vadd.xlane.f32.xlu0 %v44
  %v65 = vpop.xlane.xlu0 %64
  %66 = vadd.xlane.f32.xlu0 %v45
  %v67 = vpop.xlane.xlu0 %66
  %68 = vadd.xlane.f32.xlu0 %v46
  %v69 = vpop.xlane.xlu0 %68
  %70 = vadd.xlane.f32.xlu0 %v47
  %v71 = vpop.xlane.xlu0 %70
  %72 = vadd.xlane.f32.xlu0 %v48
  %v73 = vpop.xlane.xlu0 %72
  %74 = vadd.xlane.f32.xlu0 %v49
  %v75 = vpop.xlane.xlu0 %74
  %76 = vadd.xlane.f32.xlu0 %v50
  %v77 = vpop.xlane.xlu0 %76
  %78 = vadd.xlane.f32.xlu0 %v51
  %v79 = vpop.xlane.xlu0 %78
  %80 = vadd.xlane.f32.xlu0 %v52
  %v81 = vpop.xlane.xlu0 %80
  %82 = vadd.xlane.f32.xlu0 %v53
  %v83 = vpop.xlane.xlu0 %82
  %84 = vadd.xlane.f32.xlu0 %v54
  %v85 = vpop.xlane.xlu0 %84
  %86 = vadd.xlane.f32.xlu0 %v55
  %v87 = vpop.xlane.xlu0 %86
  %vm88 = vcmp.gt.f32.partialorder %v57, 0.0
  %vm89 = vcmp.gt.f32.partialorder %v59, 0.0
  %vm90 = vcmp.gt.f32.partialorder %v61, 0.0
  %vm91 = vcmp.gt.f32.partialorder %v63, 0.0
  %vm92 = vcmp.gt.f32.partialorder %v65, 0.0
  %vm93 = vcmp.gt.f32.partialorder %v67, 0.0
  %vm94 = vcmp.gt.f32.partialorder %v69, 0.0
  %vm95 = vcmp.gt.f32.partialorder %v71, 0.0
  %vm96 = vcmp.gt.f32.partialorder %v73, 0.0
  %vm97 = vcmp.gt.f32.partialorder %v75, 0.0
  %vm98 = vcmp.gt.f32.partialorder %v77, 0.0
  %vm99 = vcmp.gt.f32.partialorder %v79, 0.0
  %vm100 = vcmp.gt.f32.partialorder %v81, 0.0
  %vm101 = vcmp.gt.f32.partialorder %v83, 0.0
  %vm102 = vcmp.gt.f32.partialorder %v85, 0.0
  %vm103 = vcmp.gt.f32.partialorder %v87, 0.0
  %v104 = vrsqrt.pop %v57
  %v105 = vrsqrt.pop %v59
  %v106 = vrsqrt.pop %v61
  %v107 = vrsqrt.pop %v63
  %v108 = vrsqrt.pop %v65
  %v109 = vrsqrt.pop %v67
  %v110 = vrsqrt.pop %v69
  %v111 = vrsqrt.pop %v71
  %v112 = vrsqrt.pop %v73
  %v113 = vrsqrt.pop %v75
  %v114 = vrsqrt.pop %v77
  %v115 = vrsqrt.pop %v79
  %v116 = vrsqrt.pop %v81
  %v117 = vrsqrt.pop %v83
  %v118 = vrsqrt.pop %v85
  %v119 = vrsqrt.pop %v87
  %v120 = vsel %vm88, %v104, 0.0
  %v121 = vsel %vm89, %v105, 0.0
  %v122 = vsel %vm90, %v106, 0.0
  %v123 = vsel %vm91, %v107, 0.0
  %v124 = vsel %vm92, %v108, 0.0
  %v125 = vsel %vm93, %v109, 0.0
  %v126 = vsel %vm94, %v110, 0.0
  %v127 = vsel %vm95, %v111, 0.0
  %v128 = vsel %vm96, %v112, 0.0
  %v129 = vsel %vm97, %v113, 0.0
  %v130 = vsel %vm98, %v114, 0.0
  %v131 = vsel %vm99, %v115, 0.0
  %v132 = vsel %vm100, %v116, 0.0
  %v133 = vsel %vm101, %v117, 0.0
  %v134 = vsel %vm102, %v118, 0.0
  %v135 = vsel %vm103, %v119, 0.0
  %v136 = vld [vmem:[%s1] sm:$0xf]
  %v137 = vld [vmem:[%s1 + $0x4] sm:$0xf]
  %v138 = vld [vmem:[%s1 + $0x8] sm:$0xf]
  %v139 = vld [vmem:[%s1 + $0xc] sm:$0xf]
  %v140 = vld [vmem:[%s1 + $0x10] sm:$0xf]
  %v141 = vld [vmem:[%s1 + $0x14] sm:$0xf]
  %v142 = vld [vmem:[%s1 + $0x18] sm:$0xf]
  %v143 = vld [vmem:[%s1 + $0x1c] sm:$0xf]
  %v144 = vld [vmem:[%s1 + $0x20] sm:$0xf]
  %v145 = vld [vmem:[%s1 + $0x24] sm:$0xf]
  %v146 = vld [vmem:[%s1 + $0x28] sm:$0xf]
  %v147 = vld [vmem:[%s1 + $0x2c] sm:$0xf]
  %v148 = vld [vmem:[%s1 + $0x30] sm:$0xf]
  %v149 = vld [vmem:[%s1 + $0x34] sm:$0xf]
  %v150 = vld [vmem:[%s1 + $0x38] sm:$0xf]
  %v151 = vld [vmem:[%s1 + $0x3c] sm:$0xf]
  %v152 = vld [vmem:[%s2] sm:$0xf]
  %v153 = vld [vmem:[%s2 + $0x4] sm:$0xf]
  %v154 = vld [vmem:[%s3] sm:$0x1]
  %v155 = vld [vmem:[%s4] sm:$0xf]
  %v156 = vld [vmem:[%s4 + $0x4] sm:$0xf]
  %v157 = vld [vmem:[%s4 + $0x8] sm:$0xf]
  %v158 = vld [vmem:[%s4 + $0xc] sm:$0xf]
  %v159 = vld [vmem:[%s5] sm:$0x1]
  %v176 = vunpack.c.l.b16 %v136
  %v177 = vunpack.c.l.b16 %v137
  %v178 = vunpack.c.l.b16 %v138
  %v179 = vunpack.c.l.b16 %v139
  %v180 = vunpack.c.l.b16 %v140
  %v181 = vunpack.c.l.b16 %v141
  %v182 = vunpack.c.l.b16 %v142
  %v183 = vunpack.c.l.b16 %v143
  %v184 = vunpack.c.l.b16 %v144
  %v185 = vunpack.c.l.b16 %v145
  %v186 = vunpack.c.l.b16 %v146
  %v187 = vunpack.c.l.b16 %v147
  %v188 = vunpack.c.l.b16 %v148
  %v189 = vunpack.c.l.b16 %v149
  %v190 = vunpack.c.l.b16 %v150
  %v191 = vunpack.c.l.b16 %v151
  %v192 = vpack.c.b16 %v177, %v176
  %v193 = vpack.c.b16 %v179, %v178
  %v194 = vpack.c.b16 %v181, %v180
  %v195 = vpack.c.b16 %v183, %v182
  %v196 = vpack.c.b16 %v185, %v184
  %v197 = vpack.c.b16 %v187, %v186
  %v198 = vpack.c.b16 %v189, %v188
  %v199 = vpack.c.b16 %v191, %v190
  %v202 = vunpack.c.l.b16 %v152
  %v203 = vunpack.c.l.b16 %v153
  %v204 = vpack.c.b16 %v203, %v202
  %vm206 = vcmask 130048
  %v208 = vsel %vm206, %v192, 0
  %v211 = vsel %vm206, %v193, 0
  %v214 = vsel %vm206, %v194, 0
  %v217 = vsel %vm206, %v195, 0
  %v220 = vsel %vm206, %v196, 0
  %v223 = vsel %vm206, %v197, 0
  %v226 = vsel %vm206, %v198, 0
  %v229 = vsel %vm206, %v199, 0
  %231 = vmatprep.subr.bf16.mxu0 0
  %232 = vmatpush1.bf16.msra.mxu0 %v204
  %233 = vmatprep.subr.bf16.mxu0 0
  %234 = vmatpush1.bf16.msra.mxu0 0
  %235 = vmatprep.subr.bf16.mxu0 0
  %236 = vmatpush1.bf16.msra.mxu0 0
  %237 = vmatprep.subr.bf16.mxu0 0
  %238 = vmatpush1.bf16.msra.mxu0 0
  %239 = vmatprep.subr.bf16.mxu0 0
  %240 = vmatpush1.bf16.msra.mxu0 0
  %241 = vmatprep.subr.bf16.mxu0 0
  %242 = vmatpush1.bf16.msra.mxu0 0
  %243 = vmatprep.subr.bf16.mxu0 0
  %244 = vmatpush1.bf16.msra.mxu0 0
  %245 = vmatprep.subr.bf16.mxu0 0
  %246 = vmatpush1.bf16.msra.mxu0 0
  %247 = vmatprep.subr.bf16.mxu0 0
  %248 = vmatpush1.bf16.msra.mxu0 0
  %249 = vmatprep.subr.bf16.mxu0 0
  %250 = vmatpush1.bf16.msra.mxu0 0
  %251 = vmatprep.subr.bf16.mxu0 0
  %252 = vmatpush1.bf16.msra.mxu0 0
  %253 = vmatprep.subr.bf16.mxu0 0
  %254 = vmatpush1.bf16.msra.mxu0 0
  %255 = vmatprep.subr.bf16.mxu0 0
  %256 = vmatpush1.bf16.msra.mxu0 0
  %257 = vmatprep.subr.bf16.mxu0 0
  %258 = vmatpush1.bf16.msra.mxu0 0
  %259 = vmatprep.subr.bf16.mxu0 0
  %260 = vmatpush1.bf16.msra.mxu0 0
  %261 = vmatprep.subr.bf16.mxu0 0
  %262 = vmatpush1.bf16.msra.mxu0 0
  %263 = vmatprep.mubr.bf16.mxu0 0
  %264 = vmatmul.mubr.bf16.gmra.mrb[0].mxu0 %v208
  %v265 = vpop.f32.mrb[0].mxu0
  %v266 = vadd.f32 0.0, %v265
  %v267 = vpop.f32.mrb[0].mxu0
  %v268 = vpop.f32.mrb[0].mxu0
  %v269 = vadd.f32 0.0, %v268
  %v270 = vpop.f32.mrb[0].mxu0
  %271 = vmatprep.mubr.bf16.mxu0 0
  %272 = vmatmul.mubr.bf16.gmra.mrb[0].mxu0 %v211
  %v273 = vpop.f32.mrb[0].mxu0
  %v274 = vadd.f32 0.0, %v273
  %v275 = vpop.f32.mrb[0].mxu0
  %v276 = vpop.f32.mrb[0].mxu0
  %v277 = vadd.f32 0.0, %v276
  %v278 = vpop.f32.mrb[0].mxu0
  %279 = vmatprep.mubr.bf16.mxu0 0
  %280 = vmatmul.mubr.bf16.gmra.mrb[0].mxu0 %v214
  %v281 = vpop.f32.mrb[0].mxu0
  %v282 = vadd.f32 0.0, %v281
  %v283 = vpop.f32.mrb[0].mxu0
  %v284 = vpop.f32.mrb[0].mxu0
  %v285 = vadd.f32 0.0, %v284
  %v286 = vpop.f32.mrb[0].mxu0
  %287 = vmatprep.mubr.bf16.mxu0 0
  %288 = vmatmul.mubr.bf16.gmra.mrb[0].mxu0 %v217
  %v289 = vpop.f32.mrb[0].mxu0
  %v290 = vadd.f32 0.0, %v289
  %v291 = vpop.f32.mrb[0].mxu0
  %v292 = vpop.f32.mrb[0].mxu0
  %v293 = vadd.f32 0.0, %v292
  %v294 = vpop.f32.mrb[0].mxu0
  %295 = vmatprep.mubr.bf16.mxu0 0
  %296 = vmatmul.mubr.bf16.gmra.mrb[0].mxu0 %v220
  %v297 = vpop.f32.mrb[0].mxu0
  %v298 = vadd.f32 0.0, %v297
  %v299 = vpop.f32.mrb[0].mxu0
  %v300 = vpop.f32.mrb[0].mxu0
  %v301 = vadd.f32 0.0, %v300
  %v302 = vpop.f32.mrb[0].mxu0
  %303 = vmatprep.mubr.bf16.mxu0 0
  %304 = vmatmul.mubr.bf16.gmra.mrb[0].mxu0 %v223
  %v305 = vpop.f32.mrb[0].mxu0
  %v306 = vadd.f32 0.0, %v305
  %v307 = vpop.f32.mrb[0].mxu0
  %v308 = vpop.f32.mrb[0].mxu0
  %v309 = vadd.f32 0.0, %v308
  %v310 = vpop.f32.mrb[0].mxu0
  %311 = vmatprep.mubr.bf16.mxu0 0
  %312 = vmatmul.mubr.bf16.gmra.mrb[0].mxu0 %v226
  %v313 = vpop.f32.mrb[0].mxu0
  %v314 = vadd.f32 0.0, %v313
  %v315 = vpop.f32.mrb[0].mxu0
  %v316 = vpop.f32.mrb[0].mxu0
  %v317 = vadd.f32 0.0, %v316
  %v318 = vpop.f32.mrb[0].mxu0
  %319 = vmatprep.mubr.bf16.mxu0 0
  %320 = vmatmul.mubr.bf16.gmra.mrb[0].mxu0 %v229
  %v321 = vpop.f32.mrb[0].mxu0
  %v322 = vadd.f32 0.0, %v321
  %v323 = vpop.f32.mrb[0].mxu0
  %v324 = vpop.f32.mrb[0].mxu0
  %v325 = vadd.f32 0.0, %v324
  %v326 = vpop.f32.mrb[0].mxu0
  %327 = vdwg.mxu0
  %v328 = vmul.f32 %v266, %v120
  %v329 = vmul.f32 %v269, %v121
  %v330 = vmul.f32 %v274, %v122
  %v331 = vmul.f32 %v277, %v123
  %v332 = vmul.f32 %v282, %v124
  %v333 = vmul.f32 %v285, %v125
  %v334 = vmul.f32 %v290, %v126
  %v335 = vmul.f32 %v293, %v127
  %v336 = vmul.f32 %v298, %v128
  %v337 = vmul.f32 %v301, %v129
  %v338 = vmul.f32 %v306, %v130
  %v339 = vmul.f32 %v309, %v131
  %v340 = vmul.f32 %v314, %v132
  %v341 = vmul.f32 %v317, %v133
  %v342 = vmul.f32 %v322, %v134
  %v343 = vmul.f32 %v325, %v135
  %v344 = vpack.c.bf16 %v329, %v328
  %v345 = vpack.c.bf16 %v331, %v330
  %v346 = vpack.c.bf16 %v333, %v332
  %v347 = vpack.c.bf16 %v335, %v334
  %v348 = vpack.c.bf16 %v337, %v336
  %v349 = vpack.c.bf16 %v339, %v338
  %v350 = vpack.c.bf16 %v341, %v340
  %v351 = vpack.c.bf16 %v343, %v342
  %v368 = vunpack.c.l.b16 %v24
  %v369 = vunpack.c.l.b16 %v25
  %v370 = vunpack.c.l.b16 %v26
  %v371 = vunpack.c.l.b16 %v27
  %v372 = vunpack.c.l.b16 %v28
  %v373 = vunpack.c.l.b16 %v29
  %v374 = vunpack.c.l.b16 %v30
  %v375 = vunpack.c.l.b16 %v31
  %v376 = vunpack.c.l.b16 %v32
  %v377 = vunpack.c.l.b16 %v33
  %v378 = vunpack.c.l.b16 %v34
  %v379 = vunpack.c.l.b16 %v35
  %v380 = vunpack.c.l.b16 %v36
  %v381 = vunpack.c.l.b16 %v37
  %v382 = vunpack.c.l.b16 %v38
  %v383 = vunpack.c.l.b16 %v39
  %v384 = vpack.c.b16 %v369, %v368
  %v385 = vpack.c.b16 %v371, %v370
  %v386 = vpack.c.b16 %v373, %v372
  %v387 = vpack.c.b16 %v375, %v374
  %v388 = vpack.c.b16 %v377, %v376
  %v389 = vpack.c.b16 %v379, %v378
  %v390 = vpack.c.b16 %v381, %v380
  %v391 = vpack.c.b16 %v383, %v382
  %400 = vmatprep.subr.bf16.mxu0 0
  %401 = vmatpush1.bf16.msra.mxu0 %v344
  %402 = vmatprep.subr.bf16.mxu0 0
  %403 = vmatpush1.bf16.msra.mxu0 %v345
  %404 = vmatprep.subr.bf16.mxu0 0
  %405 = vmatpush1.bf16.msra.mxu0 %v346
  %406 = vmatprep.subr.bf16.mxu0 0
  %407 = vmatpush1.bf16.msra.mxu0 %v347
  %408 = vmatprep.subr.bf16.mxu0 0
  %409 = vmatpush1.bf16.msra.mxu0 %v348
  %410 = vmatprep.subr.bf16.mxu0 0
  %411 = vmatpush1.bf16.msra.mxu0 %v349
  %412 = vmatprep.subr.bf16.mxu0 0
  %413 = vmatpush1.bf16.msra.mxu0 %v350
  %414 = vmatprep.subr.bf16.mxu0 0
  %415 = vmatpush1.bf16.msra.mxu0 %v351
  %416 = vmatprep.subr.bf16.mxu0 0
  %417 = vmatpush1.bf16.msra.mxu0 0
  %418 = vmatprep.subr.bf16.mxu0 0
  %419 = vmatpush1.bf16.msra.mxu0 0
  %420 = vmatprep.subr.bf16.mxu0 0
  %421 = vmatpush1.bf16.msra.mxu0 0
  %422 = vmatprep.subr.bf16.mxu0 0
  %423 = vmatpush1.bf16.msra.mxu0 0
  %424 = vmatprep.subr.bf16.mxu0 0
  %425 = vmatpush1.bf16.msra.mxu0 0
  %426 = vmatprep.subr.bf16.mxu0 0
  %427 = vmatpush1.bf16.msra.mxu0 0
  %428 = vmatprep.subr.bf16.mxu0 0
  %429 = vmatpush1.bf16.msra.mxu0 0
  %430 = vmatprep.subr.bf16.mxu0 0
  %431 = vmatpush1.bf16.msra.mxu0 0
  %432 = vmatprep.mubr.bf16.mxu0 0
  %433 = vmatmul.mubr.bf16.gmra.mrb[0].mxu0 %v384
  %v434 = vpop.f32.mrb[0].mxu0
  %v435 = vadd.f32 0.0, %v434
  %v436 = vpop.f32.mrb[0].mxu0
  %v437 = vpop.f32.mrb[0].mxu0
  %v438 = vadd.f32 0.0, %v437
  %v439 = vpop.f32.mrb[0].mxu0
  %440 = vmatprep.mubr.bf16.mxu0 0
  %441 = vmatmul.mubr.bf16.gmra.mrb[0].mxu0 %v385
  %v442 = vpop.f32.mrb[0].mxu0
  %v443 = vadd.f32 0.0, %v442
  %v444 = vpop.f32.mrb[0].mxu0
  %v445 = vpop.f32.mrb[0].mxu0
  %v446 = vadd.f32 0.0, %v445
  %v447 = vpop.f32.mrb[0].mxu0
  %448 = vmatprep.mubr.bf16.mxu0 0
  %449 = vmatmul.mubr.bf16.gmra.mrb[0].mxu0 %v386
  %v450 = vpop.f32.mrb[0].mxu0
  %v451 = vadd.f32 0.0, %v450
  %v452 = vpop.f32.mrb[0].mxu0
  %v453 = vpop.f32.mrb[0].mxu0
  %v454 = vadd.f32 0.0, %v453
  %v455 = vpop.f32.mrb[0].mxu0
  %456 = vmatprep.mubr.bf16.mxu0 0
  %457 = vmatmul.mubr.bf16.gmra.mrb[0].mxu0 %v387
  %v458 = vpop.f32.mrb[0].mxu0
  %v459 = vadd.f32 0.0, %v458
  %v460 = vpop.f32.mrb[0].mxu0
  %v461 = vpop.f32.mrb[0].mxu0
  %v462 = vadd.f32 0.0, %v461
  %v463 = vpop.f32.mrb[0].mxu0
  %464 = vmatprep.mubr.bf16.mxu0 0
  %465 = vmatmul.mubr.bf16.gmra.mrb[0].mxu0 %v388
  %v466 = vpop.f32.mrb[0].mxu0
  %v467 = vadd.f32 0.0, %v466
  %v468 = vpop.f32.mrb[0].mxu0
  %v469 = vpop.f32.mrb[0].mxu0
  %v470 = vadd.f32 0.0, %v469
  %v471 = vpop.f32.mrb[0].mxu0
  %472 = vmatprep.mubr.bf16.mxu0 0
  %473 = vmatmul.mubr.bf16.gmra.mrb[0].mxu0 %v389
  %v474 = vpop.f32.mrb[0].mxu0
  %v475 = vadd.f32 0.0, %v474
  %v476 = vpop.f32.mrb[0].mxu0
  %v477 = vpop.f32.mrb[0].mxu0
  %v478 = vadd.f32 0.0, %v477
  %v479 = vpop.f32.mrb[0].mxu0
  %480 = vmatprep.mubr.bf16.mxu0 0
  %481 = vmatmul.mubr.bf16.gmra.mrb[0].mxu0 %v390
  %v482 = vpop.f32.mrb[0].mxu0
  %v483 = vadd.f32 0.0, %v482
  %v484 = vpop.f32.mrb[0].mxu0
  %v485 = vpop.f32.mrb[0].mxu0
  %v486 = vadd.f32 0.0, %v485
  %v487 = vpop.f32.mrb[0].mxu0
  %488 = vmatprep.mubr.bf16.mxu0 0
  %489 = vmatmul.mubr.bf16.gmra.mrb[0].mxu0 %v391
  %v490 = vpop.f32.mrb[0].mxu0
  %v491 = vadd.f32 0.0, %v490
  %v492 = vpop.f32.mrb[0].mxu0
  %v493 = vpop.f32.mrb[0].mxu0
  %v494 = vadd.f32 0.0, %v493
  %v495 = vpop.f32.mrb[0].mxu0
  %496 = vdwg.mxu0
  %v497 = vmul.f32 %v435, %v120
  %v498 = vmul.f32 %v438, %v121
  %v499 = vmul.f32 %v443, %v122
  %v500 = vmul.f32 %v446, %v123
  %v501 = vmul.f32 %v451, %v124
  %v502 = vmul.f32 %v454, %v125
  %v503 = vmul.f32 %v459, %v126
  %v504 = vmul.f32 %v462, %v127
  %v505 = vmul.f32 %v467, %v128
  %v506 = vmul.f32 %v470, %v129
  %v507 = vmul.f32 %v475, %v130
  %v508 = vmul.f32 %v478, %v131
  %v509 = vmul.f32 %v483, %v132
  %v510 = vmul.f32 %v486, %v133
  %v511 = vmul.f32 %v491, %v134
  %v512 = vmul.f32 %v494, %v135
  %v514 = vlaneseq
  %v515 = vshrl.u32 %v514, 7
  %v516 = vsub.s32 0, %v515
  %v517 = vrot.slane %v154, %v516
  %v519 = vadd.f32 %v497, %v517
  %v520 = vadd.f32 %v498, %v517
  %v521 = vadd.f32 %v499, %v517
  %v522 = vadd.f32 %v500, %v517
  %v523 = vadd.f32 %v501, %v517
  %v524 = vadd.f32 %v502, %v517
  %v525 = vadd.f32 %v503, %v517
  %v526 = vadd.f32 %v504, %v517
  %v527 = vadd.f32 %v505, %v517
  %v528 = vadd.f32 %v506, %v517
  %v529 = vadd.f32 %v507, %v517
  %v530 = vadd.f32 %v508, %v517
  %v531 = vadd.f32 %v509, %v517
  %v532 = vadd.f32 %v510, %v517
  %v533 = vadd.f32 %v511, %v517
  %v534 = vadd.f32 %v512, %v517
  %v535 = vmax.f32 %v519, 0.0
  %v536 = vmax.f32 %v520, 0.0
  %v537 = vmax.f32 %v521, 0.0
  %v538 = vmax.f32 %v522, 0.0
  %v539 = vmax.f32 %v523, 0.0
  %v540 = vmax.f32 %v524, 0.0
  %v541 = vmax.f32 %v525, 0.0
  %v542 = vmax.f32 %v526, 0.0
  %v543 = vmax.f32 %v527, 0.0
  %v544 = vmax.f32 %v528, 0.0
  %v545 = vmax.f32 %v529, 0.0
  %v546 = vmax.f32 %v530, 0.0
  %v547 = vmax.f32 %v531, 0.0
  %v548 = vmax.f32 %v532, 0.0
  %v549 = vmax.f32 %v533, 0.0
  %v550 = vmax.f32 %v534, 0.0
  %v551 = vpack.c.bf16 %v536, %v535
  %v552 = vpack.c.bf16 %v538, %v537
  %v553 = vpack.c.bf16 %v540, %v539
  %v554 = vpack.c.bf16 %v542, %v541
  %v555 = vpack.c.bf16 %v544, %v543
  %v556 = vpack.c.bf16 %v546, %v545
  %v557 = vpack.c.bf16 %v548, %v547
  %v558 = vpack.c.bf16 %v550, %v549
  %v563 = vunpack.c.l.b16 %v155
  %v564 = vunpack.c.l.b16 %v156
  %v565 = vunpack.c.l.b16 %v157
  %v566 = vunpack.c.l.b16 %v158
  %v567 = vpack.c.b16 %v564, %v563
  %v568 = vpack.c.b16 %v566, %v565
  %vm571 = vcmask 261120
  %v573 = vsel %vm571, %v551, 0
  %v576 = vsel %vm571, %v552, 0
  %v579 = vsel %vm571, %v553, 0
  %v582 = vsel %vm571, %v554, 0
  %v585 = vsel %vm571, %v555, 0
  %v588 = vsel %vm571, %v556, 0
  %v591 = vsel %vm571, %v557, 0
  %v594 = vsel %vm571, %v558, 0
  %596 = vmatprep.subr.bf16.mxu0 0
  %597 = vmatpush1.bf16.msra.mxu0 %v567
  %598 = vmatprep.subr.bf16.mxu0 0
  %599 = vmatpush1.bf16.msra.mxu0 %v568
  %600 = vmatprep.subr.bf16.mxu0 0
  %601 = vmatpush1.bf16.msra.mxu0 0
  %602 = vmatprep.subr.bf16.mxu0 0
  %603 = vmatpush1.bf16.msra.mxu0 0
  %604 = vmatprep.subr.bf16.mxu0 0
  %605 = vmatpush1.bf16.msra.mxu0 0
  %606 = vmatprep.subr.bf16.mxu0 0
  %607 = vmatpush1.bf16.msra.mxu0 0
  %608 = vmatprep.subr.bf16.mxu0 0
  %609 = vmatpush1.bf16.msra.mxu0 0
  %610 = vmatprep.subr.bf16.mxu0 0
  %611 = vmatpush1.bf16.msra.mxu0 0
  %612 = vmatprep.subr.bf16.mxu0 0
  %613 = vmatpush1.bf16.msra.mxu0 0
  %614 = vmatprep.subr.bf16.mxu0 0
  %615 = vmatpush1.bf16.msra.mxu0 0
  %616 = vmatprep.subr.bf16.mxu0 0
  %617 = vmatpush1.bf16.msra.mxu0 0
  %618 = vmatprep.subr.bf16.mxu0 0
  %619 = vmatpush1.bf16.msra.mxu0 0
  %620 = vmatprep.subr.bf16.mxu0 0
  %621 = vmatpush1.bf16.msra.mxu0 0
  %622 = vmatprep.subr.bf16.mxu0 0
  %623 = vmatpush1.bf16.msra.mxu0 0
  %624 = vmatprep.subr.bf16.mxu0 0
  %625 = vmatpush1.bf16.msra.mxu0 0
  %626 = vmatprep.subr.bf16.mxu0 0
  %627 = vmatpush1.bf16.msra.mxu0 0
  %628 = vmatprep.mubr.bf16.mxu0 0
  %629 = vmatmul.mubr.bf16.gmra.mrb[0].mxu0 %v573
  %v630 = vpop.f32.mrb[0].mxu0
  %v631 = vadd.f32 0.0, %v630
  %v632 = vpop.f32.mrb[0].mxu0
  %v633 = vpop.f32.mrb[0].mxu0
  %v634 = vadd.f32 0.0, %v633
  %v635 = vpop.f32.mrb[0].mxu0
  %636 = vmatprep.mubr.bf16.mxu0 0
  %637 = vmatmul.mubr.bf16.gmra.mrb[0].mxu0 %v576
  %v638 = vpop.f32.mrb[0].mxu0
  %v639 = vadd.f32 0.0, %v638
  %v640 = vpop.f32.mrb[0].mxu0
  %v641 = vpop.f32.mrb[0].mxu0
  %v642 = vadd.f32 0.0, %v641
  %v643 = vpop.f32.mrb[0].mxu0
  %644 = vmatprep.mubr.bf16.mxu0 0
  %645 = vmatmul.mubr.bf16.gmra.mrb[0].mxu0 %v579
  %v646 = vpop.f32.mrb[0].mxu0
  %v647 = vadd.f32 0.0, %v646
  %v648 = vpop.f32.mrb[0].mxu0
  %v649 = vpop.f32.mrb[0].mxu0
  %v650 = vadd.f32 0.0, %v649
  %v651 = vpop.f32.mrb[0].mxu0
  %652 = vmatprep.mubr.bf16.mxu0 0
  %653 = vmatmul.mubr.bf16.gmra.mrb[0].mxu0 %v582
  %v654 = vpop.f32.mrb[0].mxu0
  %v655 = vadd.f32 0.0, %v654
  %v656 = vpop.f32.mrb[0].mxu0
  %v657 = vpop.f32.mrb[0].mxu0
  %v658 = vadd.f32 0.0, %v657
  %v659 = vpop.f32.mrb[0].mxu0
  %660 = vmatprep.mubr.bf16.mxu0 0
  %661 = vmatmul.mubr.bf16.gmra.mrb[0].mxu0 %v585
  %v662 = vpop.f32.mrb[0].mxu0
  %v663 = vadd.f32 0.0, %v662
  %v664 = vpop.f32.mrb[0].mxu0
  %v665 = vpop.f32.mrb[0].mxu0
  %v666 = vadd.f32 0.0, %v665
  %v667 = vpop.f32.mrb[0].mxu0
  %668 = vmatprep.mubr.bf16.mxu0 0
  %669 = vmatmul.mubr.bf16.gmra.mrb[0].mxu0 %v588
  %v670 = vpop.f32.mrb[0].mxu0
  %v671 = vadd.f32 0.0, %v670
  %v672 = vpop.f32.mrb[0].mxu0
  %v673 = vpop.f32.mrb[0].mxu0
  %v674 = vadd.f32 0.0, %v673
  %v675 = vpop.f32.mrb[0].mxu0
  %676 = vmatprep.mubr.bf16.mxu0 0
  %677 = vmatmul.mubr.bf16.gmra.mrb[0].mxu0 %v591
  %v678 = vpop.f32.mrb[0].mxu0
  %v679 = vadd.f32 0.0, %v678
  %v680 = vpop.f32.mrb[0].mxu0
  %v681 = vpop.f32.mrb[0].mxu0
  %v682 = vadd.f32 0.0, %v681
  %v683 = vpop.f32.mrb[0].mxu0
  %684 = vmatprep.mubr.bf16.mxu0 0
  %685 = vmatmul.mubr.bf16.gmra.mrb[0].mxu0 %v594
  %v686 = vpop.f32.mrb[0].mxu0
  %v687 = vadd.f32 0.0, %v686
  %v688 = vpop.f32.mrb[0].mxu0
  %v689 = vpop.f32.mrb[0].mxu0
  %v690 = vadd.f32 0.0, %v689
  %v691 = vpop.f32.mrb[0].mxu0
  %692 = vdwg.mxu0
  %v693 = vmul.f32 %v631, %v120
  %v694 = vmul.f32 %v634, %v121
  %v695 = vmul.f32 %v639, %v122
  %v696 = vmul.f32 %v642, %v123
  %v697 = vmul.f32 %v647, %v124
  %v698 = vmul.f32 %v650, %v125
  %v699 = vmul.f32 %v655, %v126
  %v700 = vmul.f32 %v658, %v127
  %v701 = vmul.f32 %v663, %v128
  %v702 = vmul.f32 %v666, %v129
  %v703 = vmul.f32 %v671, %v130
  %v704 = vmul.f32 %v674, %v131
  %v705 = vmul.f32 %v679, %v132
  %v706 = vmul.f32 %v682, %v133
  %v707 = vmul.f32 %v687, %v134
  %v708 = vmul.f32 %v690, %v135
  %v709 = vpack.c.bf16 %v694, %v693
  %v710 = vpack.c.bf16 %v696, %v695
  %v711 = vpack.c.bf16 %v698, %v697
  %v712 = vpack.c.bf16 %v700, %v699
  %v713 = vpack.c.bf16 %v702, %v701
  %v714 = vpack.c.bf16 %v704, %v703
  %v715 = vpack.c.bf16 %v706, %v705
  %v716 = vpack.c.bf16 %v708, %v707
  %717 = vmatprep.subr.bf16.mxu0 0
  %718 = vmatpush1.bf16.msra.mxu0 %v709
  %719 = vmatprep.subr.bf16.mxu0 0
  %720 = vmatpush1.bf16.msra.mxu0 %v710
  %721 = vmatprep.subr.bf16.mxu0 0
  %722 = vmatpush1.bf16.msra.mxu0 %v711
  %723 = vmatprep.subr.bf16.mxu0 0
  %724 = vmatpush1.bf16.msra.mxu0 %v712
  %725 = vmatprep.subr.bf16.mxu0 0
  %726 = vmatpush1.bf16.msra.mxu0 %v713
  %727 = vmatprep.subr.bf16.mxu0 0
  %728 = vmatpush1.bf16.msra.mxu0 %v714
  %729 = vmatprep.subr.bf16.mxu0 0
  %730 = vmatpush1.bf16.msra.mxu0 %v715
  %731 = vmatprep.subr.bf16.mxu0 0
  %732 = vmatpush1.bf16.msra.mxu0 %v716
  %733 = vmatprep.subr.bf16.mxu0 0
  %734 = vmatpush1.bf16.msra.mxu0 0
  %735 = vmatprep.subr.bf16.mxu0 0
  %736 = vmatpush1.bf16.msra.mxu0 0
  %737 = vmatprep.subr.bf16.mxu0 0
  %738 = vmatpush1.bf16.msra.mxu0 0
  %739 = vmatprep.subr.bf16.mxu0 0
  %740 = vmatpush1.bf16.msra.mxu0 0
  %741 = vmatprep.subr.bf16.mxu0 0
  %742 = vmatpush1.bf16.msra.mxu0 0
  %743 = vmatprep.subr.bf16.mxu0 0
  %744 = vmatpush1.bf16.msra.mxu0 0
  %745 = vmatprep.subr.bf16.mxu0 0
  %746 = vmatpush1.bf16.msra.mxu0 0
  %747 = vmatprep.subr.bf16.mxu0 0
  %748 = vmatpush1.bf16.msra.mxu0 0
  %749 = vmatprep.mubr.bf16.mxu0 0
  %750 = vmatmul.mubr.bf16.gmra.mrb[0].mxu0 %v384
  %v751 = vpop.f32.mrb[0].mxu0
  %v752 = vadd.f32 0.0, %v751
  %v753 = vpop.f32.mrb[0].mxu0
  %v754 = vpop.f32.mrb[0].mxu0
  %v755 = vadd.f32 0.0, %v754
  %v756 = vpop.f32.mrb[0].mxu0
  %757 = vmatprep.mubr.bf16.mxu0 0
  %758 = vmatmul.mubr.bf16.gmra.mrb[0].mxu0 %v385
  %v759 = vpop.f32.mrb[0].mxu0
  %v760 = vadd.f32 0.0, %v759
  %v761 = vpop.f32.mrb[0].mxu0
  %v762 = vpop.f32.mrb[0].mxu0
  %v763 = vadd.f32 0.0, %v762
  %v764 = vpop.f32.mrb[0].mxu0
  %765 = vmatprep.mubr.bf16.mxu0 0
  %766 = vmatmul.mubr.bf16.gmra.mrb[0].mxu0 %v386
  %v767 = vpop.f32.mrb[0].mxu0
  %v768 = vadd.f32 0.0, %v767
  %v769 = vpop.f32.mrb[0].mxu0
  %v770 = vpop.f32.mrb[0].mxu0
  %v771 = vadd.f32 0.0, %v770
  %v772 = vpop.f32.mrb[0].mxu0
  %773 = vmatprep.mubr.bf16.mxu0 0
  %774 = vmatmul.mubr.bf16.gmra.mrb[0].mxu0 %v387
  %v775 = vpop.f32.mrb[0].mxu0
  %v776 = vadd.f32 0.0, %v775
  %v777 = vpop.f32.mrb[0].mxu0
  %v778 = vpop.f32.mrb[0].mxu0
  %v779 = vadd.f32 0.0, %v778
  %v780 = vpop.f32.mrb[0].mxu0
  %781 = vmatprep.mubr.bf16.mxu0 0
  %782 = vmatmul.mubr.bf16.gmra.mrb[0].mxu0 %v388
  %v783 = vpop.f32.mrb[0].mxu0
  %v784 = vadd.f32 0.0, %v783
  %v785 = vpop.f32.mrb[0].mxu0
  %v786 = vpop.f32.mrb[0].mxu0
  %v787 = vadd.f32 0.0, %v786
  %v788 = vpop.f32.mrb[0].mxu0
  %789 = vmatprep.mubr.bf16.mxu0 0
  %790 = vmatmul.mubr.bf16.gmra.mrb[0].mxu0 %v389
  %v791 = vpop.f32.mrb[0].mxu0
  %v792 = vadd.f32 0.0, %v791
  %v793 = vpop.f32.mrb[0].mxu0
  %v794 = vpop.f32.mrb[0].mxu0
  %v795 = vadd.f32 0.0, %v794
  %v796 = vpop.f32.mrb[0].mxu0
  %797 = vmatprep.mubr.bf16.mxu0 0
  %798 = vmatmul.mubr.bf16.gmra.mrb[0].mxu0 %v390
  %v799 = vpop.f32.mrb[0].mxu0
  %v800 = vadd.f32 0.0, %v799
  %v801 = vpop.f32.mrb[0].mxu0
  %v802 = vpop.f32.mrb[0].mxu0
  %v803 = vadd.f32 0.0, %v802
  %v804 = vpop.f32.mrb[0].mxu0
  %805 = vmatprep.mubr.bf16.mxu0 0
  %806 = vmatmul.mubr.bf16.gmra.mrb[0].mxu0 %v391
  %v807 = vpop.f32.mrb[0].mxu0
  %v808 = vadd.f32 0.0, %v807
  %v809 = vpop.f32.mrb[0].mxu0
  %v810 = vpop.f32.mrb[0].mxu0
  %v811 = vadd.f32 0.0, %v810
  %v812 = vpop.f32.mrb[0].mxu0
  %813 = vdwg.mxu0
  %v814 = vmul.f32 %v752, %v120
  %v815 = vmul.f32 %v755, %v121
  %v816 = vmul.f32 %v760, %v122
  %v817 = vmul.f32 %v763, %v123
  %v818 = vmul.f32 %v768, %v124
  %v819 = vmul.f32 %v771, %v125
  %v820 = vmul.f32 %v776, %v126
  %v821 = vmul.f32 %v779, %v127
  %v822 = vmul.f32 %v784, %v128
  %v823 = vmul.f32 %v787, %v129
  %v824 = vmul.f32 %v792, %v130
  %v825 = vmul.f32 %v795, %v131
  %v826 = vmul.f32 %v800, %v132
  %v827 = vmul.f32 %v803, %v133
  %v828 = vmul.f32 %v808, %v134
  %v829 = vmul.f32 %v811, %v135
  %v831 = vlaneseq
  %v832 = vshrl.u32 %v831, 7
  %v833 = vsub.s32 0, %v832
  %v834 = vrot.slane %v159, %v833
  %v836 = vadd.f32 %v814, %v834
  %v837 = vadd.f32 %v815, %v834
  %v838 = vadd.f32 %v816, %v834
  %v839 = vadd.f32 %v817, %v834
  %v840 = vadd.f32 %v818, %v834
  %v841 = vadd.f32 %v819, %v834
  %v842 = vadd.f32 %v820, %v834
  %v843 = vadd.f32 %v821, %v834
  %v844 = vadd.f32 %v822, %v834
  %v845 = vadd.f32 %v823, %v834
  %v846 = vadd.f32 %v824, %v834
  %v847 = vadd.f32 %v825, %v834
  %v848 = vadd.f32 %v826, %v834
  %v849 = vadd.f32 %v827, %v834
  %v850 = vadd.f32 %v828, %v834
  %v851 = vadd.f32 %v829, %v834
  %852 = vst.msk [vmem:[%s6] sm:$0xff] %vm206, %v836
  %853 = vst.msk [vmem:[%s6 + $0x8] sm:$0xff] %vm206, %v837
  %854 = vst.msk [vmem:[%s6 + $0x10] sm:$0xff] %vm206, %v838
  %855 = vst.msk [vmem:[%s6 + $0x18] sm:$0xff] %vm206, %v839
  %856 = vst.msk [vmem:[%s6 + $0x20] sm:$0xff] %vm206, %v840
  %857 = vst.msk [vmem:[%s6 + $0x28] sm:$0xff] %vm206, %v841
  %858 = vst.msk [vmem:[%s6 + $0x30] sm:$0xff] %vm206, %v842
  %859 = vst.msk [vmem:[%s6 + $0x38] sm:$0xff] %vm206, %v843
  %860 = vst.msk [vmem:[%s6 + $0x40] sm:$0xff] %vm206, %v844
  %861 = vst.msk [vmem:[%s6 + $0x48] sm:$0xff] %vm206, %v845
  %862 = vst.msk [vmem:[%s6 + $0x50] sm:$0xff] %vm206, %v846
  %863 = vst.msk [vmem:[%s6 + $0x58] sm:$0xff] %vm206, %v847
  %864 = vst.msk [vmem:[%s6 + $0x60] sm:$0xff] %vm206, %v848
  %865 = vst.msk [vmem:[%s6 + $0x68] sm:$0xff] %vm206, %v849
  %866 = vst.msk [vmem:[%s6 + $0x70] sm:$0xff] %vm206, %v850
  %867 = vst.msk [vmem:[%s6 + $0x78] sm:$0xff] %vm206, %v851
  // Predicated region
  $region26: #{gcn_forward.1} parent=0 // pred_check
    _
  $region27: #{gcn_forward.1} parent=0 // pred_check_branch
    %869 = sbr.rel (0) target = $region29
  $region28: #{gcn_forward.1} parent=0 // pred_region
    _
  $region29: #{gcn_forward.1} parent=0 // pred_fallthru
    _
  // Predicated region
  $region30: #{gcn_forward.1} parent=0 // pred_check
    _
  $region31: #{gcn_forward.1} parent=0 // pred_check_branch
    %871 = sbr.rel (0) target = $region33
  $region32: #{gcn_forward.1} parent=0 // pred_region
    _
  $region33: #{gcn_forward.1} parent=0 // pred_fallthru
    _

</llo_original>
